<compile_context>
chip_gen: v5e
topology: v5e:2x2
jax: 0.10.0
libtpu: 0.0.40
codegen_flags: <defaults>
</compile_context>

<pallas_src>
import jax
import jax.numpy as jnp
from jax.experimental import pallas as pl
from jax.experimental.pallas import tpu as pltpu


# Node tile used for both the output-row tile and the k-reduction tile of the
# aggregation matmul. 128 fits the demo exactly; raise to 256-512 for real PPI
# graph sizes (still well inside the 32 MiB scoped-VMEM budget in bf16).
_TILE_N = 128
_LANE = 128
_SUBLANE = 8
_VMEM_LIMIT = 32 * 1024 * 1024  # explicit scoped-VMEM budget, safe on v5e/v6e/v7x


def _round_up(x, m):
    return ((x + m - 1) // m) * m


def _pad2(a, rows, cols):
    out = jnp.zeros((rows, cols), a.dtype)
    return out.at[: a.shape[0], : a.shape[1]].set(a)


def _agg_kernel(x2d_ref, adj_ref, w1_ref, b1_ref, h_ref):
    """h[i_tile] = sum_k adj_hat[i_tile, k_tile] @ (x2d[k_tile] @ W_fc1' + b_fc1).

    fc1 (with the length-axis mean folded into W_fc1') is recomputed per (i, k) tile;
    that is only ~LF/TILE_N extra work relative to the O(N^2) aggregation and keeps
    every grid step independent (safe under megacore sharding of the i axis).
    """
    k = pl.program_id(1)

    @pl.when(k == 0)
    def _():
        h_ref[...] = jnp.zeros_like(h_ref)

    xk = jnp.dot(x2d_ref[...], w1_ref[...],
                 preferred_element_type=jnp.float32) + b1_ref[...]
    h_ref[...] += jnp.dot(adj_ref[...], xk.astype(jnp.bfloat16),
                          preferred_element_type=jnp.float32)


def _edge_mlp_kernel(ids_ref, h_ref,
                     wg1_ref, bg1_ref, wg2_ref, bg2_ref,
                     wl1_ref, bl1_ref, wl2_ref, bl2_ref,
                     wf2_ref, bf2_ref,
                     out_ref, gath_ref):
    f32, bf16 = jnp.float32, jnp.bfloat16
    n_sel = gath_ref.shape[0]          # 2 * E_pad (small, static)

    # Gather the aggregated features of the two endpoints of every train edge.
    # Row selection commutes with all per-node layers below, so the GIN MLP /
    # lin1 / lin2 / fc2 only ever run on 2*E_train rows instead of all N nodes.
    for e in range(n_sel):
        idx = ids_ref[e]
        gath_ref[pl.ds(e, 1), :] = h_ref[pl.ds(idx, 1), :]

    g = gath_ref[...]

    # GIN MLP: Linear -> ReLU -> Linear -> ReLU   (BatchNorm folded into lin1 below)
    g = jnp.maximum(jnp.dot(g.astype(bf16), wg1_ref[...],
                            preferred_element_type=f32) + bg1_ref[...], 0.0)
    g = jnp.maximum(jnp.dot(g.astype(bf16), wg2_ref[...],
                            preferred_element_type=f32) + bg2_ref[...], 0.0)

    # x = relu(lin1(x)) with the eval-mode BatchNorm affine pre-folded into wl1/bl1
    g = jnp.maximum(jnp.dot(g.astype(bf16), wl1_ref[...],
                            preferred_element_type=f32) + bl1_ref[...], 0.0)

    # TODO(synk): F.dropout(p=0.5, training=...) is identity at inference; no op emitted.

    # x = lin2(x)
    g = jnp.dot(g.astype(bf16), wl2_ref[...],
                preferred_element_type=f32) + bl2_ref[...]

    # feature_fusion=None -> elementwise multiply of the two endpoints, then fc2
    e_half = n_sel // 2
    fused = (g[:e_half] * g[e_half:]).astype(bf16)
    out_ref[...] = jnp.dot(fused, wf2_ref[...],
                           preferred_element_type=f32) + bf2_ref[...]


def gin_net2_forward(x3d, edge_index, train_edge_id, params):
    (w_fc1, b_fc1, eps, w_g1, b_g1, w_g2, b_g2, bn_scale, bn_shift,
     w_l1, b_l1, w_l2, b_l2, w_fc2, b_fc2) = params

    f32, bf16 = jnp.float32, jnp.bfloat16
    N, L, F = x3d.shape
    G = w_fc1.shape[1]
    H = w_g1.shape[1]
    C = w_fc2.shape[1]
    E = int(train_edge_id.shape[0])

    LF = L * F
    N_pad = _round_up(N, _TILE_N)
    LF_pad = _round_up(LF, _LANE)
    G_pad = _round_up(G, _LANE)
    H_pad = _round_up(H, _LANE)
    C_pad = _round_up(C, _LANE)
    E_pad = _round_up(E, _SUBLANE)

    # --- wrapper-side algebraic folds (exact rewrites) ----------------------
    # mean over the length axis folded into fc1: mean(x,1) @ W == reshape(x) @ (tile(W,L)/L)
    w_fc1m = jnp.tile(w_fc1, (L, 1)) / L                       # [L*F, G]
    # eval-mode BatchNorm affine folded into lin1
    w_l1f = w_l1 * bn_scale.reshape(H, 1)
    b_l1f = b_l1 + bn_shift @ w_l1
    # (1 + eps) folded into the adjacency diagonal (GIN sum-aggregation as A_hat @ x)
    adj_hat = jnp.zeros((N_pad, N_pad), f32)
    adj_hat = adj_hat.at[edge_index[1], edge_index[0]].add(1.0)
    adj_hat = adj_hat.at[jnp.arange(N), jnp.arange(N)].add(1.0 + eps)

    # --- pad to lane-dense shapes, cast matmul operands to bf16 --------------
    x2d_p = _pad2(x3d.reshape(N, LF), N_pad, LF_pad).astype(bf16)
    adj_p = adj_hat.astype(bf16)
    w_fc1_p = _pad2(w_fc1m, LF_pad, G_pad).astype(bf16)
    b_fc1_p = _pad2(b_fc1, 1, G_pad).astype(f32)
    w_g1_p = _pad2(w_g1, G_pad, H_pad).astype(bf16)
    b_g1_p = _pad2(b_g1, 1, H_pad).astype(f32)
    w_g2_p = _pad2(w_g2, H_pad, H_pad).astype(bf16)
    b_g2_p = _pad2(b_g2, 1, H_pad).astype(f32)
    w_l1_p = _pad2(w_l1f, H_pad, H_pad).astype(bf16)
    b_l1_p = _pad2(b_l1f, 1, H_pad).astype(f32)
    w_l2_p = _pad2(w_l2, H_pad, H_pad).astype(bf16)
    b_l2_p = _pad2(b_l2, 1, H_pad).astype(f32)
    w_fc2_p = _pad2(w_fc2, H_pad, C_pad).astype(bf16)
    b_fc2_p = _pad2(b_fc2, 1, C_pad).astype(f32)

    # train-edge endpoint node ids (endpoint-0 rows first, then endpoint-1 rows)
    node_id = edge_index[:, train_edge_id].astype(jnp.int32)   # [2, E]
    ids = jnp.zeros((2 * E_pad,), jnp.int32)
    ids = ids.at[:E].set(node_id[0]).at[E_pad:E_pad + E].set(node_id[1])

    # --- kernel 1: fc1 + GIN sum-aggregation, gridded & software-pipelined ---
    gi = N_pad // _TILE_N
    gk = N_pad // _TILE_N
    h = pl.pallas_call(
        _agg_kernel,
        out_shape=jax.ShapeDtypeStruct((N_pad, G_pad), f32),
        grid_spec=pltpu.PrefetchScalarGridSpec(
            num_scalar_prefetch=0,
            grid=(gi, gk),
            in_specs=[
                pl.BlockSpec((_TILE_N, LF_pad), lambda i, k: (k, 0)),    # x2d[k]
                pl.BlockSpec((_TILE_N, _TILE_N), lambda i, k: (i, k)),   # adj_hat[i, k]
                pl.BlockSpec((LF_pad, G_pad), lambda i, k: (0, 0)),      # fc1 weight (resident)
                pl.BlockSpec((1, G_pad), lambda i, k: (0, 0)),           # fc1 bias (resident)
            ],
            out_specs=pl.BlockSpec((_TILE_N, G_pad), lambda i, k: (i, 0)),
        ),
        compiler_params=pltpu.CompilerParams(
            dimension_semantics=("parallel", "arbitrary"),
            vmem_limit_bytes=_VMEM_LIMIT,
        ),
    )(x2d_p, adj_p, w_fc1_p, b_fc1_p)

    # --- kernel 2: endpoint gather + GIN MLP + lin1/lin2 + fusion + fc2 ------
    # TODO(synk): for very large node counts, stream h row-gathers from HBM
    # (memory_space=pl.ANY + manual DMA) instead of keeping h fully VMEM-resident.
    vmem = pl.BlockSpec(memory_space=pltpu.MemorySpace.VMEM)
    smem = pl.BlockSpec(memory_space=pltpu.MemorySpace.SMEM)
    out_p = pl.pallas_call(
        _edge_mlp_kernel,
        out_shape=jax.ShapeDtypeStruct((E_pad, C_pad), f32),
        in_specs=[smem] + [vmem] * 11,
        out_specs=vmem,
        scratch_shapes=[pltpu.VMEM((2 * E_pad, G_pad), f32)],
        compiler_params=pltpu.CompilerParams(vmem_limit_bytes=_VMEM_LIMIT),
    )(ids, h, w_g1_p, b_g1_p, w_g2_p, b_g2_p,
      w_l1_p, b_l1_p, w_l2_p, b_l2_p, w_fc2_p, b_fc2_p)

    return out_p[:E, :C]


if __name__ == "__main__":
    key = jax.random.PRNGKey(0)

    # Small shapes consistent with the module defaults (in_feature=13, class_num=7)
    N, L, F = 16, 8, 13      # num_protein, in_len, in_feature (embedding_size)
    G, H, C = 32, 64, 7      # gin_in_feature, hidden, class_num
    E = 24                   # num_edge
    E_TRAIN = 8              # num_train_edge

    keys = jax.random.split(key, 32)
    _ki = iter(keys)

    def init(shape, scale=0.1):
        return (scale * jax.random.normal(next(_ki), shape)).astype(jnp.float32)

    # inputs (raw module inputs: x, edge_index, train_edge_id)
    x3d = init((N, L, F), 1.0)
    src = jax.random.randint(next(_ki), (E,), 0, N)
    dst = jax.random.randint(next(_ki), (E,), 0, N)
    edge_index = jnp.stack([src, dst], axis=0)                     # [2, E]
    train_edge_id = jax.random.randint(next(_ki), (E_TRAIN,), 0, E)

    # deterministic parameters (shapes from GIN_Net2.__init__)
    w_fc1 = init((F, G)); b_fc1 = init((1, G))
    eps = jnp.float32(0.1)                        # GINConv train_eps parameter
    w_g1 = init((G, H)); b_g1 = init((1, H))
    w_g2 = init((H, H)); b_g2 = init((1, H))
    gamma = 1.0 + init((1, H)); beta = init((1, H))
    run_mean = init((1, H)); run_var = 1.0 + jnp.abs(init((1, H)))
    bn_scale = gamma / jnp.sqrt(run_var + 1e-5)
    bn_shift = beta - run_mean * bn_scale
    w_l1 = init((H, H)); b_l1 = init((1, H))
    w_l2 = init((H, H)); b_l2 = init((1, H))
    w_fc2 = init((H, C)); b_fc2 = init((1, C))

    params = (w_fc1, b_fc1, eps, w_g1, b_g1, w_g2, b_g2, bn_scale, bn_shift,
              w_l1, b_l1, w_l2, b_l2, w_fc2, b_fc2)

    out = gin_net2_forward(x3d, edge_index, train_edge_id, params)
    out = jax.block_until_ready(out)
    assert out.shape == (E_TRAIN, C), out.shape

    # pure-JAX f32 reference of the original (un-folded) forward semantics
    adj = jnp.zeros((N, N), jnp.float32).at[edge_index[1], edge_index[0]].add(1.0)
    xr = x3d.mean(axis=1)
    xr = xr @ w_fc1 + b_fc1
    hr = (1.0 + eps) * xr + adj @ xr
    hr = jnp.maximum(hr @ w_g1 + b_g1, 0.0)
    hr = jnp.maximum(hr @ w_g2 + b_g2, 0.0)
    hr = hr * bn_scale + bn_shift
    hr = jnp.maximum(hr @ w_l1 + b_l1, 0.0)
    hr = hr @ w_l2 + b_l2
    node_id = edge_index[:, train_edge_id]
    ref = (hr[node_id[0]] * hr[node_id[1]]) @ w_fc2 + b_fc2

    err = float(jnp.max(jnp.abs(out - ref)))
    assert jnp.allclose(out, ref, atol=2e-2, rtol=2e-2), err   # bf16-matmul tolerance
    print("KERNEL_OK")
</pallas_src>

<mosaic_0001>
module attributes {stable_mosaic.version = 11 : i64} {
  func.func @_agg_kernel(%arg0: i32, %arg1: i32, %arg2: memref<128x128xbf16, #tpu.memory_space<vmem>>, %arg3: memref<128x128xbf16, #tpu.memory_space<vmem>>, %arg4: memref<128x128xbf16, #tpu.memory_space<vmem>>, %arg5: memref<1x128xf32, #tpu.memory_space<vmem>>, %arg6: memref<128x128xf32, #tpu.memory_space<vmem>>) attributes {dimension_semantics = [#tpu.dimension_semantics<parallel>, #tpu.dimension_semantics<arbitrary>], iteration_bounds = array<i64: 1, 1>, scalar_prefetch = 0 : i64, scratch_operands = 0 : i64, tpu.core_type = #tpu.core_type<tc>, window_params = [{transform_indices = @transform_0, window_bounds = array<i64: 128, 128>}, {transform_indices = @transform_1, window_bounds = array<i64: 128, 128>}, {pipeline_mode = #tpu.pipeline_mode<synchronous>, transform_indices = @transform_2, window_bounds = array<i64: 128, 128>}, {pipeline_mode = #tpu.pipeline_mode<synchronous>, transform_indices = @transform_3, window_bounds = array<i64: 1, 128>}, {transform_indices = @transform_4, window_bounds = array<i64: 128, 128>}]} {
    %c0_i32 = arith.constant 0 : i32
    %0 = arith.cmpi eq, %arg1, %c0_i32 : i32
    %1 = arith.extui %0 : i1 to i32
    %c0_i32_0 = arith.constant 0 : i32
    %2 = arith.cmpi ne, %1, %c0_i32_0 : i32
    scf.if %2 {
      %cst_13 = arith.constant 0.000000e+00 : f32
      %15 = vector.broadcast %cst_13 : f32 to vector<128x128xf32>
      %c0_14 = arith.constant 0 : index
      %c0_15 = arith.constant 0 : index
      %16 = vector.load %arg6[%c0_14, %c0_15] : memref<128x128xf32, #tpu.memory_space<vmem>>, vector<128x128xf32>
      tpu.vector_store %arg6[%c0_14, %c0_15], %15 {strides = array<i32>} : memref<128x128xf32, #tpu.memory_space<vmem>>, vector<128x128xf32>,
    } else {
    }
    %c0 = arith.constant 0 : index
    %c0_1 = arith.constant 0 : index
    %3 = vector.load %arg2[%c0, %c0_1] : memref<128x128xbf16, #tpu.memory_space<vmem>>, vector<128x128xbf16>
    %c0_2 = arith.constant 0 : index
    %c0_3 = arith.constant 0 : index
    %4 = vector.load %arg4[%c0_2, %c0_3] : memref<128x128xbf16, #tpu.memory_space<vmem>>, vector<128x128xbf16>
    %cst = arith.constant dense<0.000000e+00> : vector<128x128xf32>
    %5 = tpu.matmul %3, %4, %cst {dimension_numbers = #tpu.dot_dimension_numbers<[1], [0], [0], [1], [0, 0, 1, 1], [], []>} : vector<128x128xbf16>, vector<128x128xbf16>, vector<128x128xf32> -> vector<128x128xf32>
    %c0_4 = arith.constant 0 : index
    %c0_5 = arith.constant 0 : index
    %6 = vector.load %arg5[%c0_4, %c0_5] : memref<1x128xf32, #tpu.memory_space<vmem>>, vector<1x128xf32>
    %7 = vector.broadcast %6 : vector<1x128xf32> to vector<128x128xf32>
    %8 = arith.addf %5, %7 : vector<128x128xf32>
    %c0_6 = arith.constant 0 : index
    %c0_7 = arith.constant 0 : index
    %9 = vector.load %arg6[%c0_6, %c0_7] : memref<128x128xf32, #tpu.memory_space<vmem>>, vector<128x128xf32>
    %c0_8 = arith.constant 0 : index
    %c0_9 = arith.constant 0 : index
    %10 = vector.load %arg3[%c0_8, %c0_9] : memref<128x128xbf16, #tpu.memory_space<vmem>>, vector<128x128xbf16>
    %11 = arith.truncf %8 : vector<128x128xf32> to vector<128x128xbf16>
    %cst_10 = arith.constant dense<0.000000e+00> : vector<128x128xf32>
    %12 = tpu.matmul %10, %11, %cst_10 {dimension_numbers = #tpu.dot_dimension_numbers<[1], [0], [0], [1], [0, 0, 1, 1], [], []>} : vector<128x128xbf16>, vector<128x128xbf16>, vector<128x128xf32> -> vector<128x128xf32>
    %13 = arith.addf %9, %12 : vector<128x128xf32>
    %c0_11 = arith.constant 0 : index
    %c0_12 = arith.constant 0 : index
    %14 = vector.load %arg6[%c0_11, %c0_12] : memref<128x128xf32, #tpu.memory_space<vmem>>, vector<128x128xf32>
    tpu.vector_store %arg6[%c0_11, %c0_12], %13 {strides = array<i32>} : memref<128x128xf32, #tpu.memory_space<vmem>>, vector<128x128xf32>,
    return
  }
  func.func @transform_0(%arg0: i32, %arg1: i32) -> (i32, i32) {
    %c0_i32 = arith.constant 0 : i32
    %c0_i32_0 = arith.constant 0 : i32
    return %arg1, %c0_i32 : i32, i32
  }
  func.func @transform_1(%arg0: i32, %arg1: i32) -> (i32, i32) {
    %c0_i32 = arith.constant 0 : i32
    return %arg0, %arg1 : i32, i32
  }
  func.func @transform_2(%arg0: i32, %arg1: i32) -> (i32, i32) {
    %c0_i32 = arith.constant 0 : i32
    %c0_i32_0 = arith.constant 0 : i32
    %c0_i32_1 = arith.constant 0 : i32
    return %c0_i32, %c0_i32_0 : i32, i32
  }
  func.func @transform_3(%arg0: i32, %arg1: i32) -> (i32, i32) {
    %c0_i32 = arith.constant 0 : i32
    %c0_i32_0 = arith.constant 0 : i32
    %c0_i32_1 = arith.constant 0 : i32
    return %c0_i32, %c0_i32_0 : i32, i32
  }
  func.func @transform_4(%arg0: i32, %arg1: i32) -> (i32, i32) {
    %c0_i32 = arith.constant 0 : i32
    %c0_i32_0 = arith.constant 0 : i32
    return %arg0, %c0_i32 : i32, i32
  }
}

</mosaic_0001>

<llo_original>
// kernel: tpu_custom_call.1
$region0: #{tpu_custom_call.1}
  #allocation0 [shape = 'u32[]', space=smem, size = 0x4, offset = 0x4, fixed_abs, tag = 'smem constant byte address 0x4 - core index']
  #allocation1 [shape = 'u32[72,128]{1,0:T(1,128)}', space=vmem, size = 0x9000, scoped, tag = 'internal scratch']
  %s0 = inlined_call_operand.hbm [shape: bf16[128,128], index: 0, kind: input, shape index: {}]
  %s1 = inlined_call_operand.hbm [shape: bf16[128,128], index: 1, kind: input, shape index: {}]
  %s2 = inlined_call_operand.hbm [shape: bf16[128,128], index: 2, kind: input, shape index: {}]
  %s3 = inlined_call_operand.vmem [shape: f32[1,128], index: 3, kind: input, shape index: {}]
  %s4 = inlined_call_operand.hbm [shape: f32[128,128], index: 4, kind: output, shape index: {}]
  %s5 = sld [smem:[#allocation0]]
  $region42: #{tpu_custom_call.1} parent=0
    _
  %s7 = ssub.s32 1, %s5
  %s8 = scalar_select 0, %s7, %s5
  $region1: #{tpu_custom_call.1} parent=0
    #allocation2 [shape = 'u8[32768]{0}', space=vmem, size = 0x8000, scoped, tag = 'input window, operand 0, single buffered']
    #allocation3 [shape = 's32[1]{0}', space=sflag, size = 0x4, scoped, tag = 'scoped memory for tpu_custom_call.1']
    #allocation4 [shape = 's32[1]{0}', space=sflag, size = 0x4, scoped, tag = 'scoped memory for tpu_custom_call.1']
    #allocation5 [shape = 'u8[32768]{0}', space=vmem, size = 0x8000, scoped, tag = 'input window, operand 1, single buffered']
    #allocation6 [shape = 's32[1]{0}', space=sflag, size = 0x4, scoped, tag = 'scoped memory for tpu_custom_call.1']
    #allocation7 [shape = 'u8[32768]{0}', space=vmem, size = 0x8000, scoped, tag = 'input window, operand 2, single buffered']
    #allocation8 [shape = 'u8[65536]{0}', space=vmem, size = 0x10000, scoped, tag = 'output window, operand 0, single buffered']
    %9 = vsyncpa [#allocation3], 0
    %10 = vsyncpa [#allocation6], 0
    %11 = vsyncpa [#allocation4], 0
    // Predicated region
    $region2: #{tpu_custom_call.1} parent=1 // pred_check
      _
    $region3: #{tpu_custom_call.1} parent=1 // pred_check_branch
      %13 = sbr.rel (0) target = $region5
    $region4: #{tpu_custom_call.1} parent=1 // pred_region
      %15 = vsyncadd [#allocation3], 0
      %s16 = sshll.u32 %s0, 4
      %s17 = int_to_ptr.hbm [resolvable:$true] %s16
      %s18 = sshll.u32 [#allocation2], 4
      %s19 = int_to_ptr.vmem [resolvable:$true] %s18
      %24 = dma.hbm_to_vmem [thread:$0]  %s17, 1024, %s19, [#allocation3], 64, 64, 4
    $region5: #{tpu_custom_call.1} parent=1 // pred_fallthru
      _
    // Predicated region
    $region6: #{tpu_custom_call.1} parent=1 // pred_check
      _
    $region7: #{tpu_custom_call.1} parent=1 // pred_check_branch
      %26 = sbr.rel (0) target = $region9
    $region8: #{tpu_custom_call.1} parent=1 // pred_region
      %28 = vsyncadd [#allocation6], 0
      %s29 = sshll.u32 %s1, 4
      %s30 = int_to_ptr.hbm [resolvable:$true] %s29
      %s31 = sshll.u32 [#allocation5], 4
      %s32 = int_to_ptr.vmem [resolvable:$true] %s31
      %37 = dma.hbm_to_vmem [thread:$0]  %s30, 1024, %s32, [#allocation6], 64, 64, 4
    $region9: #{tpu_custom_call.1} parent=1 // pred_fallthru
      _
    // Predicated region
    $region10: #{tpu_custom_call.1} parent=1 // pred_check
      _
    $region11: #{tpu_custom_call.1} parent=1 // pred_check_branch
      %39 = sbr.rel (0) target = $region13
    $region12: #{tpu_custom_call.1} parent=1 // pred_region
      %41 = vsyncadd [#allocation6], 0
      %s42 = sshll.u32 %s2, 4
      %s43 = int_to_ptr.hbm [resolvable:$true] %s42
      %s44 = sshll.u32 [#allocation7], 4
      %s45 = int_to_ptr.vmem [resolvable:$true] %s44
      %50 = dma.hbm_to_vmem [thread:$0]  %s43, 1024, %s45, [#allocation6], 64, 64, 4
    $region13: #{tpu_custom_call.1} parent=1 // pred_fallthru
      _
    // Predicated region
    $region14: #{tpu_custom_call.1} parent=1 // pred_check
      _
    $region15: #{tpu_custom_call.1} parent=1 // pred_check_branch
      %52 = sbr.rel (0) target = $region17
    $region16: #{tpu_custom_call.1} parent=1 // pred_region
      _
    $region17: #{tpu_custom_call.1} parent=1 // pred_fallthru
      _
    // Predicated region
    $region18: #{tpu_custom_call.1} parent=1 // pred_check
      _
    $region19: #{tpu_custom_call.1} parent=1 // pred_check_branch
      %54 = sbr.rel (0) target = $region21
    $region20: #{tpu_custom_call.1} parent=1 // pred_region
      %56 = dma.done [#allocation3], 1024
    $region21: #{tpu_custom_call.1} parent=1 // pred_fallthru
      _
    // Predicated region
    $region22: #{tpu_custom_call.1} parent=1 // pred_check
      _
    $region23: #{tpu_custom_call.1} parent=1 // pred_check_branch
      %58 = sbr.rel (0) target = $region25
    $region24: #{tpu_custom_call.1} parent=1 // pred_region
      %60 = dma.done [#allocation6], 1024
    $region25: #{tpu_custom_call.1} parent=1 // pred_fallthru
      _
    // Predicated region
    $region26: #{tpu_custom_call.1} parent=1 // pred_check
      _
    $region27: #{tpu_custom_call.1} parent=1 // pred_check_branch
      %62 = sbr.rel (0) target = $region29
    $region28: #{tpu_custom_call.1} parent=1 // pred_region
      %64 = dma.done [#allocation6], 1024
    $region29: #{tpu_custom_call.1} parent=1 // pred_fallthru
      _
    %p65 = scmp.eq.s32.totalorder 0, 0
    // Predicated region
    $region30: #{tpu_custom_call.1} parent=1 // pred_check
      %p66 = pneg %p65
    $region31: #{tpu_custom_call.1} parent=1 // pred_check_branch
      %68 = sbr.rel (%p66) target = $region33
    $region32: #{tpu_custom_call.1} parent=1 // pred_region
      %69 = vst [vmem:[#allocation8] sm:$0xff] 0.0
      %70 = vst [vmem:[#allocation8 + $0x8] sm:$0xff] 0.0
      %71 = vst [vmem:[#allocation8 + $0x10] sm:$0xff] 0.0
      %72 = vst [vmem:[#allocation8 + $0x18] sm:$0xff] 0.0
      %73 = vst [vmem:[#allocation8 + $0x20] sm:$0xff] 0.0
      %74 = vst [vmem:[#allocation8 + $0x28] sm:$0xff] 0.0
      %75 = vst [vmem:[#allocation8 + $0x30] sm:$0xff] 0.0
      %76 = vst [vmem:[#allocation8 + $0x38] sm:$0xff] 0.0
      %77 = vst [vmem:[#allocation8 + $0x40] sm:$0xff] 0.0
      %78 = vst [vmem:[#allocation8 + $0x48] sm:$0xff] 0.0
      %79 = vst [vmem:[#allocation8 + $0x50] sm:$0xff] 0.0
      %80 = vst [vmem:[#allocation8 + $0x58] sm:$0xff] 0.0
      %81 = vst [vmem:[#allocation8 + $0x60] sm:$0xff] 0.0
      %82 = vst [vmem:[#allocation8 + $0x68] sm:$0xff] 0.0
      %83 = vst [vmem:[#allocation8 + $0x70] sm:$0xff] 0.0
      %84 = vst [vmem:[#allocation8 + $0x78] sm:$0xff] 0.0
    $region33: #{tpu_custom_call.1} parent=1 // pred_fallthru
      _
    %v85 = vld [vmem:[#allocation2] sm:$0xf]
    %v86 = vld [vmem:[#allocation2 + $0x4] sm:$0xf]
    %v87 = vld [vmem:[#allocation2 + $0x8] sm:$0xf]
    %v88 = vld [vmem:[#allocation2 + $0xc] sm:$0xf]
    %v89 = vld [vmem:[#allocation2 + $0x10] sm:$0xf]
    %v90 = vld [vmem:[#allocation2 + $0x14] sm:$0xf]
    %v91 = vld [vmem:[#allocation2 + $0x18] sm:$0xf]
    %v92 = vld [vmem:[#allocation2 + $0x1c] sm:$0xf]
    %v93 = vld [vmem:[#allocation2 + $0x20] sm:$0xf]
    %v94 = vld [vmem:[#allocation2 + $0x24] sm:$0xf]
    %v95 = vld [vmem:[#allocation2 + $0x28] sm:$0xf]
    %v96 = vld [vmem:[#allocation2 + $0x2c] sm:$0xf]
    %v97 = vld [vmem:[#allocation2 + $0x30] sm:$0xf]
    %v98 = vld [vmem:[#allocation2 + $0x34] sm:$0xf]
    %v99 = vld [vmem:[#allocation2 + $0x38] sm:$0xf]
    %v100 = vld [vmem:[#allocation2 + $0x3c] sm:$0xf]
    %v101 = vld [vmem:[#allocation7] sm:$0xf]
    %v102 = vld [vmem:[#allocation7 + $0x4] sm:$0xf]
    %v103 = vld [vmem:[#allocation7 + $0x8] sm:$0xf]
    %v104 = vld [vmem:[#allocation7 + $0xc] sm:$0xf]
    %v105 = vld [vmem:[#allocation7 + $0x10] sm:$0xf]
    %v106 = vld [vmem:[#allocation7 + $0x14] sm:$0xf]
    %v107 = vld [vmem:[#allocation7 + $0x18] sm:$0xf]
    %v108 = vld [vmem:[#allocation7 + $0x1c] sm:$0xf]
    %v109 = vld [vmem:[#allocation7 + $0x20] sm:$0xf]
    %v110 = vld [vmem:[#allocation7 + $0x24] sm:$0xf]
    %v111 = vld [vmem:[#allocation7 + $0x28] sm:$0xf]
    %v112 = vld [vmem:[#allocation7 + $0x2c] sm:$0xf]
    %v113 = vld [vmem:[#allocation7 + $0x30] sm:$0xf]
    %v114 = vld [vmem:[#allocation7 + $0x34] sm:$0xf]
    %v115 = vld [vmem:[#allocation7 + $0x38] sm:$0xf]
    %v116 = vld [vmem:[#allocation7 + $0x3c] sm:$0xf]
    %v117 = vld [vmem:[%s3] sm:$0x1]
    %v119 = vperm.slane %v117, 0
    %v137 = vunpack.c.l.b16 %v85
    %v138 = vunpack.c.l.b16 %v86
    %v139 = vunpack.c.l.b16 %v87
    %v140 = vunpack.c.l.b16 %v88
    %v141 = vunpack.c.l.b16 %v89
    %v142 = vunpack.c.l.b16 %v90
    %v143 = vunpack.c.l.b16 %v91
    %v144 = vunpack.c.l.b16 %v92
    %v145 = vunpack.c.l.b16 %v93
    %v146 = vunpack.c.l.b16 %v94
    %v147 = vunpack.c.l.b16 %v95
    %v148 = vunpack.c.l.b16 %v96
    %v149 = vunpack.c.l.b16 %v97
    %v150 = vunpack.c.l.b16 %v98
    %v151 = vunpack.c.l.b16 %v99
    %v152 = vunpack.c.l.b16 %v100
    %v153 = vpack.c.b16 %v138, %v137
    %v154 = vpack.c.b16 %v140, %v139
    %v155 = vpack.c.b16 %v142, %v141
    %v156 = vpack.c.b16 %v144, %v143
    %v157 = vpack.c.b16 %v146, %v145
    %v158 = vpack.c.b16 %v148, %v147
    %v159 = vpack.c.b16 %v150, %v149
    %v160 = vpack.c.b16 %v152, %v151
    %v185 = vunpack.c.l.b16 %v101
    %v186 = vunpack.c.l.b16 %v102
    %v187 = vunpack.c.l.b16 %v103
    %v188 = vunpack.c.l.b16 %v104
    %v189 = vunpack.c.l.b16 %v105
    %v190 = vunpack.c.l.b16 %v106
    %v191 = vunpack.c.l.b16 %v107
    %v192 = vunpack.c.l.b16 %v108
    %v193 = vunpack.c.l.b16 %v109
    %v194 = vunpack.c.l.b16 %v110
    %v195 = vunpack.c.l.b16 %v111
    %v196 = vunpack.c.l.b16 %v112
    %v197 = vunpack.c.l.b16 %v113
    %v198 = vunpack.c.l.b16 %v114
    %v199 = vunpack.c.l.b16 %v115
    %v200 = vunpack.c.l.b16 %v116
    %v201 = vpack.c.b16 %v186, %v185
    %v202 = vpack.c.b16 %v188, %v187
    %v203 = vpack.c.b16 %v190, %v189
    %v204 = vpack.c.b16 %v192, %v191
    %v205 = vpack.c.b16 %v194, %v193
    %v206 = vpack.c.b16 %v196, %v195
    %v207 = vpack.c.b16 %v198, %v197
    %v208 = vpack.c.b16 %v200, %v199
    %217 = vmatpush.bf16.msra.mxu0 %v208
    %218 = vmatpush.bf16.msra.mxu0 %v207
    %219 = vmatpush.bf16.msra.mxu0 %v206
    %220 = vmatpush.bf16.msra.mxu0 %v205
    %221 = vmatpush.bf16.msra.mxu0 %v204
    %222 = vmatpush.bf16.msra.mxu0 %v203
    %223 = vmatpush.bf16.msra.mxu0 %v202
    %224 = vmatpush.bf16.msra.mxu0 %v201
    %225 = vmatmul.bf16.gmra.mxu0 %v153
    %v226 = vpop.f32.mrf.mxu0
    %v227 = vadd.f32 %v119, %v226
    %v228 = vpop.f32.mrf.mxu0
    %v229 = vadd.f32 %v119, %v228
    %230 = vmatmul.bf16.gmra.mxu0 %v154
    %v231 = vpop.f32.mrf.mxu0
    %v232 = vadd.f32 %v119, %v231
    %v233 = vpop.f32.mrf.mxu0
    %v234 = vadd.f32 %v119, %v233
    %235 = vmatmul.bf16.gmra.mxu0 %v155
    %v236 = vpop.f32.mrf.mxu0
    %v237 = vadd.f32 %v119, %v236
    %v238 = vpop.f32.mrf.mxu0
    %v239 = vadd.f32 %v119, %v238
    %240 = vmatmul.bf16.gmra.mxu0 %v156
    %v241 = vpop.f32.mrf.mxu0
    %v242 = vadd.f32 %v119, %v241
    %v243 = vpop.f32.mrf.mxu0
    %v244 = vadd.f32 %v119, %v243
    %245 = vmatmul.bf16.gmra.mxu0 %v157
    %v246 = vpop.f32.mrf.mxu0
    %v247 = vadd.f32 %v119, %v246
    %v248 = vpop.f32.mrf.mxu0
    %v249 = vadd.f32 %v119, %v248
    %250 = vmatmul.bf16.gmra.mxu0 %v158
    %v251 = vpop.f32.mrf.mxu0
    %v252 = vadd.f32 %v119, %v251
    %v253 = vpop.f32.mrf.mxu0
    %v254 = vadd.f32 %v119, %v253
    %255 = vmatmul.bf16.gmra.mxu0 %v159
    %v256 = vpop.f32.mrf.mxu0
    %v257 = vadd.f32 %v119, %v256
    %v258 = vpop.f32.mrf.mxu0
    %v259 = vadd.f32 %v119, %v258
    %260 = vmatmul.bf16.gmra.mxu0 %v160
    %v261 = vpop.f32.mrf.mxu0
    %v262 = vadd.f32 %v119, %v261
    %v263 = vpop.f32.mrf.mxu0
    %v264 = vadd.f32 %v119, %v263
    %265 = vdwg.mxu0
    %v266 = vld [vmem:[#allocation8] sm:$0xff]
    %v267 = vld [vmem:[#allocation8 + $0x8] sm:$0xff]
    %v268 = vld [vmem:[#allocation8 + $0x10] sm:$0xff]
    %v269 = vld [vmem:[#allocation8 + $0x18] sm:$0xff]
    %v270 = vld [vmem:[#allocation8 + $0x20] sm:$0xff]
    %v271 = vld [vmem:[#allocation8 + $0x28] sm:$0xff]
    %v272 = vld [vmem:[#allocation8 + $0x30] sm:$0xff]
    %v273 = vld [vmem:[#allocation8 + $0x38] sm:$0xff]
    %v274 = vld [vmem:[#allocation8 + $0x40] sm:$0xff]
    %v275 = vld [vmem:[#allocation8 + $0x48] sm:$0xff]
    %v276 = vld [vmem:[#allocation8 + $0x50] sm:$0xff]
    %v277 = vld [vmem:[#allocation8 + $0x58] sm:$0xff]
    %v278 = vld [vmem:[#allocation8 + $0x60] sm:$0xff]
    %v279 = vld [vmem:[#allocation8 + $0x68] sm:$0xff]
    %v280 = vld [vmem:[#allocation8 + $0x70] sm:$0xff]
    %v281 = vld [vmem:[#allocation8 + $0x78] sm:$0xff]
    %v282 = vld [vmem:[#allocation5] sm:$0xf]
    %v283 = vld [vmem:[#allocation5 + $0x4] sm:$0xf]
    %v284 = vld [vmem:[#allocation5 + $0x8] sm:$0xf]
    %v285 = vld [vmem:[#allocation5 + $0xc] sm:$0xf]
    %v286 = vld [vmem:[#allocation5 + $0x10] sm:$0xf]
    %v287 = vld [vmem:[#allocation5 + $0x14] sm:$0xf]
    %v288 = vld [vmem:[#allocation5 + $0x18] sm:$0xf]
    %v289 = vld [vmem:[#allocation5 + $0x1c] sm:$0xf]
    %v290 = vld [vmem:[#allocation5 + $0x20] sm:$0xf]
    %v291 = vld [vmem:[#allocation5 + $0x24] sm:$0xf]
    %v292 = vld [vmem:[#allocation5 + $0x28] sm:$0xf]
    %v293 = vld [vmem:[#allocation5 + $0x2c] sm:$0xf]
    %v294 = vld [vmem:[#allocation5 + $0x30] sm:$0xf]
    %v295 = vld [vmem:[#allocation5 + $0x34] sm:$0xf]
    %v296 = vld [vmem:[#allocation5 + $0x38] sm:$0xf]
    %v297 = vld [vmem:[#allocation5 + $0x3c] sm:$0xf]
    %v298 = vpack.c.bf16 %v229, %v227
    %v299 = vpack.c.bf16 %v234, %v232
    %v300 = vpack.c.bf16 %v239, %v237
    %v301 = vpack.c.bf16 %v244, %v242
    %v302 = vpack.c.bf16 %v249, %v247
    %v303 = vpack.c.bf16 %v254, %v252
    %v304 = vpack.c.bf16 %v259, %v257
    %v305 = vpack.c.bf16 %v264, %v262
    %v322 = vunpack.c.l.b16 %v282
    %v323 = vunpack.c.l.b16 %v283
    %v324 = vunpack.c.l.b16 %v284
    %v325 = vunpack.c.l.b16 %v285
    %v326 = vunpack.c.l.b16 %v286
    %v327 = vunpack.c.l.b16 %v287
    %v328 = vunpack.c.l.b16 %v288
    %v329 = vunpack.c.l.b16 %v289
    %v330 = vunpack.c.l.b16 %v290
    %v331 = vunpack.c.l.b16 %v291
    %v332 = vunpack.c.l.b16 %v292
    %v333 = vunpack.c.l.b16 %v293
    %v334 = vunpack.c.l.b16 %v294
    %v335 = vunpack.c.l.b16 %v295
    %v336 = vunpack.c.l.b16 %v296
    %v337 = vunpack.c.l.b16 %v297
    %v338 = vpack.c.b16 %v323, %v322
    %v339 = vpack.c.b16 %v325, %v324
    %v340 = vpack.c.b16 %v327, %v326
    %v341 = vpack.c.b16 %v329, %v328
    %v342 = vpack.c.b16 %v331, %v330
    %v343 = vpack.c.b16 %v333, %v332
    %v344 = vpack.c.b16 %v335, %v334
    %v345 = vpack.c.b16 %v337, %v336
    %354 = vmatpush.bf16.msra.mxu0 %v305
    %355 = vmatpush.bf16.msra.mxu0 %v304
    %356 = vmatpush.bf16.msra.mxu0 %v303
    %357 = vmatpush.bf16.msra.mxu0 %v302
    %358 = vmatpush.bf16.msra.mxu0 %v301
    %359 = vmatpush.bf16.msra.mxu0 %v300
    %360 = vmatpush.bf16.msra.mxu0 %v299
    %361 = vmatpush.bf16.msra.mxu0 %v298
    %362 = vmatmul.bf16.gmra.mxu0 %v338
    %v363 = vpop.f32.mrf.mxu0
    %v364 = vadd.f32 0.0, %v363
    %v365 = vpop.f32.mrf.mxu0
    %v366 = vadd.f32 0.0, %v365
    %367 = vmatmul.bf16.gmra.mxu0 %v339
    %v368 = vpop.f32.mrf.mxu0
    %v369 = vadd.f32 0.0, %v368
    %v370 = vpop.f32.mrf.mxu0
    %v371 = vadd.f32 0.0, %v370
    %372 = vmatmul.bf16.gmra.mxu0 %v340
    %v373 = vpop.f32.mrf.mxu0
    %v374 = vadd.f32 0.0, %v373
    %v375 = vpop.f32.mrf.mxu0
    %v376 = vadd.f32 0.0, %v375
    %377 = vmatmul.bf16.gmra.mxu0 %v341
    %v378 = vpop.f32.mrf.mxu0
    %v379 = vadd.f32 0.0, %v378
    %v380 = vpop.f32.mrf.mxu0
    %v381 = vadd.f32 0.0, %v380
    %382 = vmatmul.bf16.gmra.mxu0 %v342
    %v383 = vpop.f32.mrf.mxu0
    %v384 = vadd.f32 0.0, %v383
    %v385 = vpop.f32.mrf.mxu0
    %v386 = vadd.f32 0.0, %v385
    %387 = vmatmul.bf16.gmra.mxu0 %v343
    %v388 = vpop.f32.mrf.mxu0
    %v389 = vadd.f32 0.0, %v388
    %v390 = vpop.f32.mrf.mxu0
    %v391 = vadd.f32 0.0, %v390
    %392 = vmatmul.bf16.gmra.mxu0 %v344
    %v393 = vpop.f32.mrf.mxu0
    %v394 = vadd.f32 0.0, %v393
    %v395 = vpop.f32.mrf.mxu0
    %v396 = vadd.f32 0.0, %v395
    %397 = vmatmul.bf16.gmra.mxu0 %v345
    %v398 = vpop.f32.mrf.mxu0
    %v399 = vadd.f32 0.0, %v398
    %v400 = vpop.f32.mrf.mxu0
    %v401 = vadd.f32 0.0, %v400
    %402 = vdwg.mxu0
    %v403 = vadd.f32 %v266, %v364
    %v404 = vadd.f32 %v267, %v366
    %v405 = vadd.f32 %v268, %v369
    %v406 = vadd.f32 %v269, %v371
    %v407 = vadd.f32 %v270, %v374
    %v408 = vadd.f32 %v271, %v376
    %v409 = vadd.f32 %v272, %v379
    %v410 = vadd.f32 %v273, %v381
    %v411 = vadd.f32 %v274, %v384
    %v412 = vadd.f32 %v275, %v386
    %v413 = vadd.f32 %v276, %v389
    %v414 = vadd.f32 %v277, %v391
    %v415 = vadd.f32 %v278, %v394
    %v416 = vadd.f32 %v279, %v396
    %v417 = vadd.f32 %v280, %v399
    %v418 = vadd.f32 %v281, %v401
    %419 = vst [vmem:[#allocation8] sm:$0xff] %v403
    %420 = vst [vmem:[#allocation8 + $0x8] sm:$0xff] %v404
    %421 = vst [vmem:[#allocation8 + $0x10] sm:$0xff] %v405
    %422 = vst [vmem:[#allocation8 + $0x18] sm:$0xff] %v406
    %423 = vst [vmem:[#allocation8 + $0x20] sm:$0xff] %v407
    %424 = vst [vmem:[#allocation8 + $0x28] sm:$0xff] %v408
    %425 = vst [vmem:[#allocation8 + $0x30] sm:$0xff] %v409
    %426 = vst [vmem:[#allocation8 + $0x38] sm:$0xff] %v410
    %427 = vst [vmem:[#allocation8 + $0x40] sm:$0xff] %v411
    %428 = vst [vmem:[#allocation8 + $0x48] sm:$0xff] %v412
    %429 = vst [vmem:[#allocation8 + $0x50] sm:$0xff] %v413
    %430 = vst [vmem:[#allocation8 + $0x58] sm:$0xff] %v414
    %431 = vst [vmem:[#allocation8 + $0x60] sm:$0xff] %v415
    %432 = vst [vmem:[#allocation8 + $0x68] sm:$0xff] %v416
    %433 = vst [vmem:[#allocation8 + $0x70] sm:$0xff] %v417
    %434 = vst [vmem:[#allocation8 + $0x78] sm:$0xff] %v418
    // Predicated region
    $region34: #{tpu_custom_call.1} parent=1 // pred_check
      _
    $region35: #{tpu_custom_call.1} parent=1 // pred_check_branch
      %436 = sbr.rel (0) target = $region37
    $region36: #{tpu_custom_call.1} parent=1 // pred_region
      %438 = vsyncadd [#allocation4], 0
      %s439 = sshll.u32 [#allocation8], 4
      %s440 = int_to_ptr.vmem [resolvable:$true] %s439
      %s441 = sshll.u32 %s4, 4
      %s442 = int_to_ptr.hbm [resolvable:$true] %s441
      %447 = dma.vmem_to_hbm [thread:$0]  %s440, 2048, %s442, [#allocation4], 128, 128, 8
    $region37: #{tpu_custom_call.1} parent=1 // pred_fallthru
      _
    // Predicated region
    $region38: #{tpu_custom_call.1} parent=1 // pred_check
      _
    $region39: #{tpu_custom_call.1} parent=1 // pred_check_branch
      %449 = sbr.rel (0) target = $region41
    $region40: #{tpu_custom_call.1} parent=1 // pred_region
      %451 = dma.done [#allocation4], 2048
    $region41: #{tpu_custom_call.1} parent=1 // pred_fallthru
      _
    %452 = vsyncpa [#allocation3], 1
    %453 = vsyncpa [#allocation6], 1
    %454 = vsyncpa [#allocation4], 1

</llo_original>
